<compile_context>
chip_gen: v7x
topology: tpu7x:2x2x1
jax: 0.10.0
libtpu: 0.0.40
codegen_flags: <defaults>
</compile_context>

<pallas_src>
import jax
import jax.numpy as jnp
import numpy as np
from jax.experimental import pallas as pl
from jax.experimental.pallas import tpu as pltpu

# ---------------------------------------------------------------------------
# Model sizes (small, synthetic)
# ---------------------------------------------------------------------------
BATCH = 256
OBS_DIM = 32
HIDDEN = 32
ACT_DIM = 8
OUT_LANES = 128                     # lane-dense packed output slab width
HEAD_ROWS = HIDDEN + 2 * ACT_DIM    # 48: [W2 | diag(std) | logprob packer]

_LOG_2PI = float(np.log(2.0 * np.pi))


def _num_tensorcores() -> int:
    """Best-effort: 2 TensorCores per chip on v7x, 1 on v5e/v6e."""
    try:
        kind = jax.devices()[0].device_kind.lower()
    except Exception:
        return 1
    return 2 if "v7" in kind else 1


# ---------------------------------------------------------------------------
# Pallas kernel: fused MLP + Gaussian sample + log-prob, single full-width store
# ---------------------------------------------------------------------------
def _policy_kernel(obs_ref, w1_ref, head_ref, aux_ref, eps_ref, out_ref):
    obs = obs_ref[...]                          # [BB, OBS_DIM]  f32
    eps = eps_ref[...]                          # [BB, ACT_DIM]  f32
    aux = aux_ref[...]                          # [8, 128]
    bias_row = aux[0:1, :]                      # [1, 128]: b2 | b2 | lp_const | 0
    b1 = aux[1:2, :HIDDEN]                      # [1, HIDDEN]

    # Layer 1: h = tanh(obs @ W1 + b1)          (MXU matmul, tanh on EUP)
    h = jnp.tanh(
        jnp.dot(obs, w1_ref[...], preferred_element_type=jnp.float32) + b1)

    # Packed head: one lane-dense [BB, 128] slab composed on the MXU.
    #   head[0:32 , :]  -> W2 in lanes 0:8 and 8:16   (mean contribution, twice)
    #   head[32:40, :]  -> diag(std) in lanes 0:8     (std * eps -> action lanes)
    #   head[40:48, :]  -> -0.5 in lanes 16:24        (-0.5 * sum(eps^2) -> lp lanes)
    # bias_row adds b2 (lanes 0:16) and lp_const (lanes 16:24); lanes 24:128 stay 0.
    head = head_ref[...]                        # [48, 128]
    slab = jnp.dot(h, head[0:HIDDEN, :],
                   preferred_element_type=jnp.float32)
    slab = slab + jnp.dot(eps, head[HIDDEN:HIDDEN + ACT_DIM, :],
                          preferred_element_type=jnp.float32)
    slab = slab + jnp.dot(eps * eps, head[HIDDEN + ACT_DIM:HEAD_ROWS, :],
                          preferred_element_type=jnp.float32)
    out_ref[...] = slab + bias_row              # single unmasked full-width store


# ---------------------------------------------------------------------------
# One-time parameter packing (hoisted out of the per-call path)
# ---------------------------------------------------------------------------
def prepare_params(params):
    w1 = np.asarray(params["w1"], np.float32)
    b1 = np.asarray(params["b1"], np.float32)
    w2 = np.asarray(params["w2"], np.float32)
    b2 = np.asarray(params["b2"], np.float32)
    log_std = np.asarray(params["log_std"], np.float32)

    std = np.exp(log_std)
    lp_const = float(-np.sum(log_std) - 0.5 * ACT_DIM * _LOG_2PI)

    head = np.zeros((HEAD_ROWS, OUT_LANES), np.float32)
    head[0:HIDDEN, 0:ACT_DIM] = w2                                    # action lanes
    head[0:HIDDEN, ACT_DIM:2 * ACT_DIM] = w2                          # mean lanes
    head[HIDDEN:HIDDEN + ACT_DIM, 0:ACT_DIM] = np.diag(std)           # std*eps
    head[HIDDEN + ACT_DIM:HEAD_ROWS, 2 * ACT_DIM:3 * ACT_DIM] = -0.5  # -0.5*sum(eps^2)

    aux = np.zeros((8, OUT_LANES), np.float32)
    aux[0, 0:ACT_DIM] = b2
    aux[0, ACT_DIM:2 * ACT_DIM] = b2
    aux[0, 2 * ACT_DIM:3 * ACT_DIM] = lp_const
    aux[1, 0:HIDDEN] = b1

    return {
        "w1": jnp.asarray(w1),
        "head": jnp.asarray(head),
        "aux": jnp.asarray(aux),
    }


# ---------------------------------------------------------------------------
# Wrapper
# ---------------------------------------------------------------------------
def gym_policy_forward(obs, prepared, eps):
    """Fused Pallas Gaussian-MLP policy forward.

    obs: [B, OBS_DIM] f32, eps: [B, ACT_DIM] f32 (reparameterization noise).
    Returns {'action', 'mean', 'log_prob'} like the torch module's forward.
    """
    B = obs.shape[0]
    num_blocks = _num_tensorcores()
    if B % num_blocks != 0 or (B // num_blocks) % 8 != 0:
        num_blocks = 1
    block_b = B // num_blocks

    packed = pl.pallas_call(
        _policy_kernel,
        out_shape=jax.ShapeDtypeStruct((B, OUT_LANES), jnp.float32),
        grid=(num_blocks,),
        in_specs=[
            pl.BlockSpec((block_b, OBS_DIM), lambda i: (i, 0)),       # obs (tiled over B)
            pl.BlockSpec((OBS_DIM, HIDDEN), lambda i: (0, 0)),        # W1 (resident)
            pl.BlockSpec((HEAD_ROWS, OUT_LANES), lambda i: (0, 0)),   # packed head (resident)
            pl.BlockSpec((8, OUT_LANES), lambda i: (0, 0)),           # bias/aux tile (resident)
            pl.BlockSpec((block_b, ACT_DIM), lambda i: (i, 0)),       # eps (tiled over B)
        ],
        out_specs=pl.BlockSpec((block_b, OUT_LANES), lambda i: (i, 0)),
        compiler_params=pltpu.CompilerParams(
            dimension_semantics=("parallel",)),   # shards blocks across TCs on v7x
    )(obs, prepared["w1"], prepared["head"], prepared["aux"], eps)

    # NOTE: at large B, consume the packed slab directly downstream instead of
    # re-slicing it (see review); irrelevant at this scale.
    return {
        "action": packed[:, 0:ACT_DIM],
        "mean": packed[:, ACT_DIM:2 * ACT_DIM],
        "log_prob": packed[:, 2 * ACT_DIM],
    }


# ---------------------------------------------------------------------------
# Deterministic parameter init (synthetic, no checkpoint)
# ---------------------------------------------------------------------------
def init_params(key):
    k1, k2, k3, _ = jax.random.split(key, 4)
    return {
        "w1": jax.random.normal(k1, (OBS_DIM, HIDDEN), jnp.float32) / np.sqrt(OBS_DIM),
        "b1": jnp.zeros((HIDDEN,), jnp.float32),
        "w2": jax.random.normal(k2, (HIDDEN, ACT_DIM), jnp.float32) / np.sqrt(HIDDEN),
        "b2": jnp.zeros((ACT_DIM,), jnp.float32),
        "log_std": jax.random.normal(k3, (ACT_DIM,), jnp.float32) * 0.1 - 0.5,
    }


# Pure-JAX reference (literal torch semantics) for correctness checking.
def reference_forward(obs, params, eps):
    hp = jax.lax.Precision.HIGHEST
    h = jnp.tanh(jnp.dot(obs, params["w1"], precision=hp) + params["b1"][None, :])
    mean = jnp.dot(h, params["w2"], precision=hp) + params["b2"][None, :]
    log_std = params["log_std"][None, :]
    std = jnp.exp(log_std)
    action = mean + std * eps
    z = (action - mean) / std
    lp = jnp.sum(-0.5 * z * z - log_std - 0.5 * _LOG_2PI, axis=-1)
    return {"action": action, "mean": mean, "log_prob": lp}


if __name__ == "__main__":
    key = jax.random.PRNGKey(0)
    k_param, k_obs, k_eps = jax.random.split(key, 3)

    params = init_params(k_param)
    prepared = prepare_params(params)      # one-time packing, outside the hot path
    obs = jax.random.normal(k_obs, (BATCH, OBS_DIM), jnp.float32)
    eps = jax.random.normal(k_eps, (BATCH, ACT_DIM), jnp.float32)

    out = gym_policy_forward(obs, prepared, eps)
    jax.block_until_ready(out)

    ref = reference_forward(obs, params, eps)
    # Tolerance covers MXU f32 pass decomposition and EUP-vs-XLA tanh ulp differences.
    np.testing.assert_allclose(np.asarray(out["action"]),
                               np.asarray(ref["action"]), rtol=1e-4, atol=1e-4)
    np.testing.assert_allclose(np.asarray(out["mean"]),
                               np.asarray(ref["mean"]), rtol=1e-4, atol=1e-4)
    np.testing.assert_allclose(np.asarray(out["log_prob"]),
                               np.asarray(ref["log_prob"]), rtol=1e-4, atol=1e-4)

    print("KERNEL_OK")
</pallas_src>

<mosaic_0001>
module attributes {stable_mosaic.version = 11 : i64} {
  func.func @_policy_kernel(%arg0: i32, %arg1: memref<256x32xf32, #tpu.memory_space<vmem>>, %arg2: memref<32x32xf32, #tpu.memory_space<vmem>>, %arg3: memref<48x128xf32, #tpu.memory_space<vmem>>, %arg4: memref<8x128xf32, #tpu.memory_space<vmem>>, %arg5: memref<256x8xf32, #tpu.memory_space<vmem>>, %arg6: memref<256x128xf32, #tpu.memory_space<vmem>>) attributes {dimension_semantics = [#tpu.dimension_semantics<parallel>], iteration_bounds = array<i64: 1>, scalar_prefetch = 0 : i64, scratch_operands = 0 : i64, tpu.core_type = #tpu.core_type<tc>, window_params = [{transform_indices = @transform_0, window_bounds = array<i64: 256, 32>}, {pipeline_mode = #tpu.pipeline_mode<synchronous>, transform_indices = @transform_1, window_bounds = array<i64: 32, 32>}, {pipeline_mode = #tpu.pipeline_mode<synchronous>, transform_indices = @transform_2, window_bounds = array<i64: 48, 128>}, {pipeline_mode = #tpu.pipeline_mode<synchronous>, transform_indices = @transform_3, window_bounds = array<i64: 8, 128>}, {transform_indices = @transform_4, window_bounds = array<i64: 256, 8>}, {transform_indices = @transform_5, window_bounds = array<i64: 256, 128>}]} {
    %c0 = arith.constant 0 : index
    %c0_0 = arith.constant 0 : index
    %0 = vector.load %arg1[%c0, %c0_0] : memref<256x32xf32, #tpu.memory_space<vmem>>, vector<256x32xf32>
    %c0_1 = arith.constant 0 : index
    %c0_2 = arith.constant 0 : index
    %1 = vector.load %arg5[%c0_1, %c0_2] : memref<256x8xf32, #tpu.memory_space<vmem>>, vector<256x8xf32>
    %c0_3 = arith.constant 0 : index
    %c0_4 = arith.constant 0 : index
    %2 = vector.load %arg4[%c0_3, %c0_4] : memref<8x128xf32, #tpu.memory_space<vmem>>, vector<8x128xf32>
    %3 = vector.extract_strided_slice %2 {offsets = [0, 0], sizes = [1, 128], strides = [1, 1]} : vector<8x128xf32> to vector<1x128xf32>
    %4 = vector.extract_strided_slice %2 {offsets = [1, 0], sizes = [1, 32], strides = [1, 1]} : vector<8x128xf32> to vector<1x32xf32>
    %c0_5 = arith.constant 0 : index
    %c0_6 = arith.constant 0 : index
    %5 = vector.load %arg2[%c0_5, %c0_6] : memref<32x32xf32, #tpu.memory_space<vmem>>, vector<32x32xf32>
    %cst = arith.constant dense<0.000000e+00> : vector<256x32xf32>
    %6 = tpu.matmul %0, %5, %cst {dimension_numbers = #tpu.dot_dimension_numbers<[1], [0], [0], [1], [0, 0, 1, 1], [], []>} : vector<256x32xf32>, vector<32x32xf32>, vector<256x32xf32> -> vector<256x32xf32>
    %7 = vector.broadcast %4 : vector<1x32xf32> to vector<256x32xf32>
    %8 = arith.addf %6, %7 : vector<256x32xf32>
    %9 = math.tanh %8 : vector<256x32xf32>
    %c0_7 = arith.constant 0 : index
    %c0_8 = arith.constant 0 : index
    %10 = vector.load %arg3[%c0_7, %c0_8] : memref<48x128xf32, #tpu.memory_space<vmem>>, vector<48x128xf32>
    %11 = vector.extract_strided_slice %10 {offsets = [0, 0], sizes = [32, 128], strides = [1, 1]} : vector<48x128xf32> to vector<32x128xf32>
    %cst_9 = arith.constant dense<0.000000e+00> : vector<256x128xf32>
    %12 = tpu.matmul %9, %11, %cst_9 {dimension_numbers = #tpu.dot_dimension_numbers<[1], [0], [0], [1], [0, 0, 1, 1], [], []>} : vector<256x32xf32>, vector<32x128xf32>, vector<256x128xf32> -> vector<256x128xf32>
    %13 = vector.extract_strided_slice %10 {offsets = [32, 0], sizes = [8, 128], strides = [1, 1]} : vector<48x128xf32> to vector<8x128xf32>
    %cst_10 = arith.constant dense<0.000000e+00> : vector<256x128xf32>
    %14 = tpu.matmul %1, %13, %cst_10 {dimension_numbers = #tpu.dot_dimension_numbers<[1], [0], [0], [1], [0, 0, 1, 1], [], []>} : vector<256x8xf32>, vector<8x128xf32>, vector<256x128xf32> -> vector<256x128xf32>
    %15 = arith.addf %12, %14 : vector<256x128xf32>
    %16 = arith.mulf %1, %1 : vector<256x8xf32>
    %17 = vector.extract_strided_slice %10 {offsets = [40, 0], sizes = [8, 128], strides = [1, 1]} : vector<48x128xf32> to vector<8x128xf32>
    %cst_11 = arith.constant dense<0.000000e+00> : vector<256x128xf32>
    %18 = tpu.matmul %16, %17, %cst_11 {dimension_numbers = #tpu.dot_dimension_numbers<[1], [0], [0], [1], [0, 0, 1, 1], [], []>} : vector<256x8xf32>, vector<8x128xf32>, vector<256x128xf32> -> vector<256x128xf32>
    %19 = arith.addf %15, %18 : vector<256x128xf32>
    %20 = vector.broadcast %3 : vector<1x128xf32> to vector<256x128xf32>
    %21 = arith.addf %19, %20 : vector<256x128xf32>
    %c0_12 = arith.constant 0 : index
    %c0_13 = arith.constant 0 : index
    %22 = vector.load %arg6[%c0_12, %c0_13] : memref<256x128xf32, #tpu.memory_space<vmem>>, vector<256x128xf32>
    tpu.vector_store %arg6[%c0_12, %c0_13], %21 {strides = array<i32>} : memref<256x128xf32, #tpu.memory_space<vmem>>, vector<256x128xf32>,
    return
  }
  func.func @transform_0(%arg0: i32) -> (i32, i32) {
    %c0_i32 = arith.constant 0 : i32
    %c0_i32_0 = arith.constant 0 : i32
    return %arg0, %c0_i32 : i32, i32
  }
  func.func @transform_1(%arg0: i32) -> (i32, i32) {
    %c0_i32 = arith.constant 0 : i32
    %c0_i32_0 = arith.constant 0 : i32
    %c0_i32_1 = arith.constant 0 : i32
    return %c0_i32, %c0_i32_0 : i32, i32
  }
  func.func @transform_2(%arg0: i32) -> (i32, i32) {
    %c0_i32 = arith.constant 0 : i32
    %c0_i32_0 = arith.constant 0 : i32
    %c0_i32_1 = arith.constant 0 : i32
    return %c0_i32, %c0_i32_0 : i32, i32
  }
  func.func @transform_3(%arg0: i32) -> (i32, i32) {
    %c0_i32 = arith.constant 0 : i32
    %c0_i32_0 = arith.constant 0 : i32
    %c0_i32_1 = arith.constant 0 : i32
    return %c0_i32, %c0_i32_0 : i32, i32
  }
  func.func @transform_4(%arg0: i32) -> (i32, i32) {
    %c0_i32 = arith.constant 0 : i32
    %c0_i32_0 = arith.constant 0 : i32
    return %arg0, %c0_i32 : i32, i32
  }
  func.func @transform_5(%arg0: i32) -> (i32, i32) {
    %c0_i32 = arith.constant 0 : i32
    %c0_i32_0 = arith.constant 0 : i32
    return %arg0, %c0_i32 : i32, i32
  }
}

</mosaic_0001>

<llo_original>
// kernel: tpu_custom_call.1
$region0: #{tpu_custom_call.1}
  #allocation0 [shape = 'u32[]', space=smem, size = 0x4, offset = 0x4, fixed_abs, tag = 'smem constant byte address 0x4 - core index']
  #allocation1 [shape = 'u32[144,128]{1,0:T(1,128)}', space=vmem, size = 0x12000, scoped, tag = 'internal scratch']
  %s0 = inlined_call_operand.vmem [shape: f32[256,32], index: 0, kind: input, shape index: {}]
  %s1 = inlined_call_operand.vmem [shape: f32[32,32], index: 1, kind: input, shape index: {}]
  %s2 = inlined_call_operand.vmem [shape: f32[48,128], index: 2, kind: input, shape index: {}]
  %s3 = inlined_call_operand.vmem [shape: f32[8,128], index: 3, kind: input, shape index: {}]
  %s4 = inlined_call_operand.vmem [shape: f32[256,8], index: 4, kind: input, shape index: {}]
  %s5 = inlined_call_operand.hbm [shape: f32[256,128], index: 5, kind: output, shape index: {}]
  %s6 = sld [smem:[#allocation0]]
  $region30: #{tpu_custom_call.1} parent=0
    _
  %s8 = ssub.s32 1, %s6
  %s9 = scalar_select 0, %s8, %s6
  $region1: #{tpu_custom_call.1} parent=0
    #allocation2 [shape = 'u8[131072]{0}', space=vmem, size = 0x20000, scoped, tag = 'output window, operand 0, single buffered']
    #allocation3 [shape = 's32[1]{0}', space=sflag, size = 0x4, scoped, tag = 'scoped memory for tpu_custom_call.1']
    %10 = vsyncpa [#allocation3], 0
    // Predicated region
    $region2: #{tpu_custom_call.1} parent=1 // pred_check
      _
    $region3: #{tpu_custom_call.1} parent=1 // pred_check_branch
      %12 = sbr.rel (0) target = $region5
    $region4: #{tpu_custom_call.1} parent=1 // pred_region
      _
    $region5: #{tpu_custom_call.1} parent=1 // pred_fallthru
      _
    // Predicated region
    $region6: #{tpu_custom_call.1} parent=1 // pred_check
      _
    $region7: #{tpu_custom_call.1} parent=1 // pred_check_branch
      %14 = sbr.rel (0) target = $region9
    $region8: #{tpu_custom_call.1} parent=1 // pred_region
      _
    $region9: #{tpu_custom_call.1} parent=1 // pred_fallthru
      _
    // Predicated region
    $region10: #{tpu_custom_call.1} parent=1 // pred_check
      _
    $region11: #{tpu_custom_call.1} parent=1 // pred_check_branch
      %16 = sbr.rel (0) target = $region13
    $region12: #{tpu_custom_call.1} parent=1 // pred_region
      _
    $region13: #{tpu_custom_call.1} parent=1 // pred_fallthru
      _
    // Predicated region
    $region14: #{tpu_custom_call.1} parent=1 // pred_check
      _
    $region15: #{tpu_custom_call.1} parent=1 // pred_check_branch
      %18 = sbr.rel (0) target = $region17
    $region16: #{tpu_custom_call.1} parent=1 // pred_region
      _
    $region17: #{tpu_custom_call.1} parent=1 // pred_fallthru
      _
    // Predicated region
    $region18: #{tpu_custom_call.1} parent=1 // pred_check
      _
    $region19: #{tpu_custom_call.1} parent=1 // pred_check_branch
      %20 = sbr.rel (0) target = $region21
    $region20: #{tpu_custom_call.1} parent=1 // pred_region
      _
    $region21: #{tpu_custom_call.1} parent=1 // pred_fallthru
      _
    %v21 = vld [vmem:[%s0] sm:$0xff]
    %v22 = vld [vmem:[%s0 + $0x8] sm:$0xff]
    %v23 = vld [vmem:[%s0 + $0x10] sm:$0xff]
    %v24 = vld [vmem:[%s0 + $0x18] sm:$0xff]
    %v25 = vld [vmem:[%s0 + $0x20] sm:$0xff]
    %v26 = vld [vmem:[%s0 + $0x28] sm:$0xff]
    %v27 = vld [vmem:[%s0 + $0x30] sm:$0xff]
    %v28 = vld [vmem:[%s0 + $0x38] sm:$0xff]
    %v29 = vld [vmem:[%s0 + $0x40] sm:$0xff]
    %v30 = vld [vmem:[%s0 + $0x48] sm:$0xff]
    %v31 = vld [vmem:[%s0 + $0x50] sm:$0xff]
    %v32 = vld [vmem:[%s0 + $0x58] sm:$0xff]
    %v33 = vld [vmem:[%s0 + $0x60] sm:$0xff]
    %v34 = vld [vmem:[%s0 + $0x68] sm:$0xff]
    %v35 = vld [vmem:[%s0 + $0x70] sm:$0xff]
    %v36 = vld [vmem:[%s0 + $0x78] sm:$0xff]
    %v37 = vld [vmem:[%s0 + $0x80] sm:$0xff]
    %v38 = vld [vmem:[%s0 + $0x88] sm:$0xff]
    %v39 = vld [vmem:[%s0 + $0x90] sm:$0xff]
    %v40 = vld [vmem:[%s0 + $0x98] sm:$0xff]
    %v41 = vld [vmem:[%s0 + $0xa0] sm:$0xff]
    %v42 = vld [vmem:[%s0 + $0xa8] sm:$0xff]
    %v43 = vld [vmem:[%s0 + $0xb0] sm:$0xff]
    %v44 = vld [vmem:[%s0 + $0xb8] sm:$0xff]
    %v45 = vld [vmem:[%s0 + $0xc0] sm:$0xff]
    %v46 = vld [vmem:[%s0 + $0xc8] sm:$0xff]
    %v47 = vld [vmem:[%s0 + $0xd0] sm:$0xff]
    %v48 = vld [vmem:[%s0 + $0xd8] sm:$0xff]
    %v49 = vld [vmem:[%s0 + $0xe0] sm:$0xff]
    %v50 = vld [vmem:[%s0 + $0xe8] sm:$0xff]
    %v51 = vld [vmem:[%s0 + $0xf0] sm:$0xff]
    %v52 = vld [vmem:[%s0 + $0xf8] sm:$0xff]
    %v53 = vld [vmem:[%s4] sm:$0xff]
    %v54 = vld [vmem:[%s4 + $0x8] sm:$0xff]
    %v55 = vld [vmem:[%s4 + $0x10] sm:$0xff]
    %v56 = vld [vmem:[%s4 + $0x18] sm:$0xff]
    %v57 = vld [vmem:[%s4 + $0x20] sm:$0xff]
    %v58 = vld [vmem:[%s4 + $0x28] sm:$0xff]
    %v59 = vld [vmem:[%s4 + $0x30] sm:$0xff]
    %v60 = vld [vmem:[%s4 + $0x38] sm:$0xff]
    %v61 = vld [vmem:[%s4 + $0x40] sm:$0xff]
    %v62 = vld [vmem:[%s4 + $0x48] sm:$0xff]
    %v63 = vld [vmem:[%s4 + $0x50] sm:$0xff]
    %v64 = vld [vmem:[%s4 + $0x58] sm:$0xff]
    %v65 = vld [vmem:[%s4 + $0x60] sm:$0xff]
    %v66 = vld [vmem:[%s4 + $0x68] sm:$0xff]
    %v67 = vld [vmem:[%s4 + $0x70] sm:$0xff]
    %v68 = vld [vmem:[%s4 + $0x78] sm:$0xff]
    %v69 = vld [vmem:[%s4 + $0x80] sm:$0xff]
    %v70 = vld [vmem:[%s4 + $0x88] sm:$0xff]
    %v71 = vld [vmem:[%s4 + $0x90] sm:$0xff]
    %v72 = vld [vmem:[%s4 + $0x98] sm:$0xff]
    %v73 = vld [vmem:[%s4 + $0xa0] sm:$0xff]
    %v74 = vld [vmem:[%s4 + $0xa8] sm:$0xff]
    %v75 = vld [vmem:[%s4 + $0xb0] sm:$0xff]
    %v76 = vld [vmem:[%s4 + $0xb8] sm:$0xff]
    %v77 = vld [vmem:[%s4 + $0xc0] sm:$0xff]
    %v78 = vld [vmem:[%s4 + $0xc8] sm:$0xff]
    %v79 = vld [vmem:[%s4 + $0xd0] sm:$0xff]
    %v80 = vld [vmem:[%s4 + $0xd8] sm:$0xff]
    %v81 = vld [vmem:[%s4 + $0xe0] sm:$0xff]
    %v82 = vld [vmem:[%s4 + $0xe8] sm:$0xff]
    %v83 = vld [vmem:[%s4 + $0xf0] sm:$0xff]
    %v84 = vld [vmem:[%s4 + $0xf8] sm:$0xff]
    %v85 = vld [vmem:[%s3] sm:$0xff]
    %v86 = vld [vmem:[%s1] sm:$0xff]
    %v87 = vld [vmem:[%s1 + $0x8] sm:$0xff]
    %v88 = vld [vmem:[%s1 + $0x10] sm:$0xff]
    %v89 = vld [vmem:[%s1 + $0x18] sm:$0xff]
    %v90 = vlaneseq
    %v91 = vshrl.u32 %v90, 7
    %v92 = vsub.s32 1, %v91
    %v93 = vrot.slane %v85, %v92
    %vm94 = vcmask 261120
    %v96 = vsel %vm94, %v21, 0
    %v99 = vsel %vm94, %v22, 0
    %v102 = vsel %vm94, %v23, 0
    %v105 = vsel %vm94, %v24, 0
    %v108 = vsel %vm94, %v25, 0
    %v111 = vsel %vm94, %v26, 0
    %v114 = vsel %vm94, %v27, 0
    %v117 = vsel %vm94, %v28, 0
    %v120 = vsel %vm94, %v29, 0
    %v123 = vsel %vm94, %v30, 0
    %v126 = vsel %vm94, %v31, 0
    %v129 = vsel %vm94, %v32, 0
    %v132 = vsel %vm94, %v33, 0
    %v135 = vsel %vm94, %v34, 0
    %v138 = vsel %vm94, %v35, 0
    %v141 = vsel %vm94, %v36, 0
    %v144 = vsel %vm94, %v37, 0
    %v147 = vsel %vm94, %v38, 0
    %v150 = vsel %vm94, %v39, 0
    %v153 = vsel %vm94, %v40, 0
    %v156 = vsel %vm94, %v41, 0
    %v159 = vsel %vm94, %v42, 0
    %v162 = vsel %vm94, %v43, 0
    %v165 = vsel %vm94, %v44, 0
    %v168 = vsel %vm94, %v45, 0
    %v171 = vsel %vm94, %v46, 0
    %v174 = vsel %vm94, %v47, 0
    %v177 = vsel %vm94, %v48, 0
    %v180 = vsel %vm94, %v49, 0
    %v183 = vsel %vm94, %v50, 0
    %v186 = vsel %vm94, %v51, 0
    %v189 = vsel %vm94, %v52, 0
    %191 = vmatprep.subr.mxu0 0.0
    %192 = vmatpush1.msra.mxu0 %v86
    %193 = vmatprep.subr.mxu0 0.0
    %194 = vmatpush1.msra.mxu0 %v87
    %195 = vmatprep.subr.mxu0 0.0
    %196 = vmatpush1.msra.mxu0 %v88
    %197 = vmatprep.subr.mxu0 0.0
    %198 = vmatpush1.msra.mxu0 %v89
    %199 = vmatprep.subr.mxu0 0.0
    %200 = vmatpush1.msra.mxu0 0.0
    %201 = vmatprep.subr.mxu0 0.0
    %202 = vmatpush1.msra.mxu0 0.0
    %203 = vmatprep.subr.mxu0 0.0
    %204 = vmatpush1.msra.mxu0 0.0
    %205 = vmatprep.subr.mxu0 0.0
    %206 = vmatpush1.msra.mxu0 0.0
    %207 = vmatprep.subr.mxu0 0.0
    %208 = vmatpush1.msra.mxu0 0.0
    %209 = vmatprep.subr.mxu0 0.0
    %210 = vmatpush1.msra.mxu0 0.0
    %211 = vmatprep.subr.mxu0 0.0
    %212 = vmatpush1.msra.mxu0 0.0
    %213 = vmatprep.subr.mxu0 0.0
    %214 = vmatpush1.msra.mxu0 0.0
    %215 = vmatprep.subr.mxu0 0.0
    %216 = vmatpush1.msra.mxu0 0.0
    %217 = vmatprep.subr.mxu0 0.0
    %218 = vmatpush1.msra.mxu0 0.0
    %219 = vmatprep.subr.mxu0 0.0
    %220 = vmatpush1.msra.mxu0 0.0
    %221 = vmatprep.subr.mxu0 0.0
    %222 = vmatpush1.msra.mxu0 0.0
    %223 = vmatprep.subr.mxu0 0.0
    %224 = vmatpush1.msra.mxu0 0.0
    %225 = vmatprep.subr.mxu0 0.0
    %226 = vmatpush1.msra.mxu0 0.0
    %227 = vmatprep.subr.mxu0 0.0
    %228 = vmatpush1.msra.mxu0 0.0
    %229 = vmatprep.subr.mxu0 0.0
    %230 = vmatpush1.msra.mxu0 0.0
    %231 = vmatprep.subr.mxu0 0.0
    %232 = vmatpush1.msra.mxu0 0.0
    %233 = vmatprep.subr.mxu0 0.0
    %234 = vmatpush1.msra.mxu0 0.0
    %235 = vmatprep.subr.mxu0 0.0
    %236 = vmatpush1.msra.mxu0 0.0
    %237 = vmatprep.subr.mxu0 0.0
    %238 = vmatpush1.msra.mxu0 0.0
    %239 = vmatprep.subr.mxu0 0.0
    %240 = vmatpush1.msra.mxu0 0.0
    %241 = vmatprep.subr.mxu0 0.0
    %242 = vmatpush1.msra.mxu0 0.0
    %243 = vmatprep.subr.mxu0 0.0
    %244 = vmatpush1.msra.mxu0 0.0
    %245 = vmatprep.subr.mxu0 0.0
    %246 = vmatpush1.msra.mxu0 0.0
    %247 = vmatprep.subr.mxu0 0.0
    %248 = vmatpush1.msra.mxu0 0.0
    %249 = vmatprep.subr.mxu0 0.0
    %250 = vmatpush1.msra.mxu0 0.0
    %251 = vmatprep.subr.mxu0 0.0
    %252 = vmatpush1.msra.mxu0 0.0
    %253 = vmatprep.subr.mxu0 0.0
    %254 = vmatpush1.msra.mxu0 0.0
    %255 = vmatprep.mubr.f32.mxu0 0.0
    %256 = vmatmul.mubr.f32.gmra.mrb[0].mxu0 %v96
    %v257 = vpop.f32.mrb[0].mxu0
    %v258 = vadd.f32 %v93, %v257
    %v259 = vpop.f32.mrb[0].mxu0
    %260 = vmatprep.mubr.f32.mxu0 0.0
    %261 = vmatmul.mubr.f32.gmra.mrb[0].mxu0 %v99
    %v262 = vpop.f32.mrb[0].mxu0
    %v263 = vadd.f32 %v93, %v262
    %v264 = vpop.f32.mrb[0].mxu0
    %265 = vmatprep.mubr.f32.mxu0 0.0
    %266 = vmatmul.mubr.f32.gmra.mrb[0].mxu0 %v102
    %v267 = vpop.f32.mrb[0].mxu0
    %v268 = vadd.f32 %v93, %v267
    %v269 = vpop.f32.mrb[0].mxu0
    %270 = vmatprep.mubr.f32.mxu0 0.0
    %271 = vmatmul.mubr.f32.gmra.mrb[0].mxu0 %v105
    %v272 = vpop.f32.mrb[0].mxu0
    %v273 = vadd.f32 %v93, %v272
    %v274 = vpop.f32.mrb[0].mxu0
    %275 = vmatprep.mubr.f32.mxu0 0.0
    %276 = vmatmul.mubr.f32.gmra.mrb[0].mxu0 %v108
    %v277 = vpop.f32.mrb[0].mxu0
    %v278 = vadd.f32 %v93, %v277
    %v279 = vpop.f32.mrb[0].mxu0
    %280 = vmatprep.mubr.f32.mxu0 0.0
    %281 = vmatmul.mubr.f32.gmra.mrb[0].mxu0 %v111
    %v282 = vpop.f32.mrb[0].mxu0
    %v283 = vadd.f32 %v93, %v282
    %v284 = vpop.f32.mrb[0].mxu0
    %285 = vmatprep.mubr.f32.mxu0 0.0
    %286 = vmatmul.mubr.f32.gmra.mrb[0].mxu0 %v114
    %v287 = vpop.f32.mrb[0].mxu0
    %v288 = vadd.f32 %v93, %v287
    %v289 = vpop.f32.mrb[0].mxu0
    %290 = vmatprep.mubr.f32.mxu0 0.0
    %291 = vmatmul.mubr.f32.gmra.mrb[0].mxu0 %v117
    %v292 = vpop.f32.mrb[0].mxu0
    %v293 = vadd.f32 %v93, %v292
    %v294 = vpop.f32.mrb[0].mxu0
    %295 = vmatprep.mubr.f32.mxu0 0.0
    %296 = vmatmul.mubr.f32.gmra.mrb[0].mxu0 %v120
    %v297 = vpop.f32.mrb[0].mxu0
    %v298 = vadd.f32 %v93, %v297
    %v299 = vpop.f32.mrb[0].mxu0
    %300 = vmatprep.mubr.f32.mxu0 0.0
    %301 = vmatmul.mubr.f32.gmra.mrb[0].mxu0 %v123
    %v302 = vpop.f32.mrb[0].mxu0
    %v303 = vadd.f32 %v93, %v302
    %v304 = vpop.f32.mrb[0].mxu0
    %305 = vmatprep.mubr.f32.mxu0 0.0
    %306 = vmatmul.mubr.f32.gmra.mrb[0].mxu0 %v126
    %v307 = vpop.f32.mrb[0].mxu0
    %v308 = vadd.f32 %v93, %v307
    %v309 = vpop.f32.mrb[0].mxu0
    %310 = vmatprep.mubr.f32.mxu0 0.0
    %311 = vmatmul.mubr.f32.gmra.mrb[0].mxu0 %v129
    %v312 = vpop.f32.mrb[0].mxu0
    %v313 = vadd.f32 %v93, %v312
    %v314 = vpop.f32.mrb[0].mxu0
    %315 = vmatprep.mubr.f32.mxu0 0.0
    %316 = vmatmul.mubr.f32.gmra.mrb[0].mxu0 %v132
    %v317 = vpop.f32.mrb[0].mxu0
    %v318 = vadd.f32 %v93, %v317
    %v319 = vpop.f32.mrb[0].mxu0
    %320 = vmatprep.mubr.f32.mxu0 0.0
    %321 = vmatmul.mubr.f32.gmra.mrb[0].mxu0 %v135
    %v322 = vpop.f32.mrb[0].mxu0
    %v323 = vadd.f32 %v93, %v322
    %v324 = vpop.f32.mrb[0].mxu0
    %325 = vmatprep.mubr.f32.mxu0 0.0
    %326 = vmatmul.mubr.f32.gmra.mrb[0].mxu0 %v138
    %v327 = vpop.f32.mrb[0].mxu0
    %v328 = vadd.f32 %v93, %v327
    %v329 = vpop.f32.mrb[0].mxu0
    %330 = vmatprep.mubr.f32.mxu0 0.0
    %331 = vmatmul.mubr.f32.gmra.mrb[0].mxu0 %v141
    %v332 = vpop.f32.mrb[0].mxu0
    %v333 = vadd.f32 %v93, %v332
    %v334 = vpop.f32.mrb[0].mxu0
    %335 = vmatprep.mubr.f32.mxu0 0.0
    %336 = vmatmul.mubr.f32.gmra.mrb[0].mxu0 %v144
    %v337 = vpop.f32.mrb[0].mxu0
    %v338 = vadd.f32 %v93, %v337
    %v339 = vpop.f32.mrb[0].mxu0
    %340 = vmatprep.mubr.f32.mxu0 0.0
    %341 = vmatmul.mubr.f32.gmra.mrb[0].mxu0 %v147
    %v342 = vpop.f32.mrb[0].mxu0
    %v343 = vadd.f32 %v93, %v342
    %v344 = vpop.f32.mrb[0].mxu0
    %345 = vmatprep.mubr.f32.mxu0 0.0
    %346 = vmatmul.mubr.f32.gmra.mrb[0].mxu0 %v150
    %v347 = vpop.f32.mrb[0].mxu0
    %v348 = vadd.f32 %v93, %v347
    %v349 = vpop.f32.mrb[0].mxu0
    %350 = vmatprep.mubr.f32.mxu0 0.0
    %351 = vmatmul.mubr.f32.gmra.mrb[0].mxu0 %v153
    %v352 = vpop.f32.mrb[0].mxu0
    %v353 = vadd.f32 %v93, %v352
    %v354 = vpop.f32.mrb[0].mxu0
    %355 = vmatprep.mubr.f32.mxu0 0.0
    %356 = vmatmul.mubr.f32.gmra.mrb[0].mxu0 %v156
    %v357 = vpop.f32.mrb[0].mxu0
    %v358 = vadd.f32 %v93, %v357
    %v359 = vpop.f32.mrb[0].mxu0
    %360 = vmatprep.mubr.f32.mxu0 0.0
    %361 = vmatmul.mubr.f32.gmra.mrb[0].mxu0 %v159
    %v362 = vpop.f32.mrb[0].mxu0
    %v363 = vadd.f32 %v93, %v362
    %v364 = vpop.f32.mrb[0].mxu0
    %365 = vmatprep.mubr.f32.mxu0 0.0
    %366 = vmatmul.mubr.f32.gmra.mrb[0].mxu0 %v162
    %v367 = vpop.f32.mrb[0].mxu0
    %v368 = vadd.f32 %v93, %v367
    %v369 = vpop.f32.mrb[0].mxu0
    %370 = vmatprep.mubr.f32.mxu0 0.0
    %371 = vmatmul.mubr.f32.gmra.mrb[0].mxu0 %v165
    %v372 = vpop.f32.mrb[0].mxu0
    %v373 = vadd.f32 %v93, %v372
    %v374 = vpop.f32.mrb[0].mxu0
    %375 = vmatprep.mubr.f32.mxu0 0.0
    %376 = vmatmul.mubr.f32.gmra.mrb[0].mxu0 %v168
    %v377 = vpop.f32.mrb[0].mxu0
    %v378 = vadd.f32 %v93, %v377
    %v379 = vpop.f32.mrb[0].mxu0
    %380 = vmatprep.mubr.f32.mxu0 0.0
    %381 = vmatmul.mubr.f32.gmra.mrb[0].mxu0 %v171
    %v382 = vpop.f32.mrb[0].mxu0
    %v383 = vadd.f32 %v93, %v382
    %v384 = vpop.f32.mrb[0].mxu0
    %385 = vmatprep.mubr.f32.mxu0 0.0
    %386 = vmatmul.mubr.f32.gmra.mrb[0].mxu0 %v174
    %v387 = vpop.f32.mrb[0].mxu0
    %v388 = vadd.f32 %v93, %v387
    %v389 = vpop.f32.mrb[0].mxu0
    %390 = vmatprep.mubr.f32.mxu0 0.0
    %391 = vmatmul.mubr.f32.gmra.mrb[0].mxu0 %v177
    %v392 = vpop.f32.mrb[0].mxu0
    %v393 = vadd.f32 %v93, %v392
    %v394 = vpop.f32.mrb[0].mxu0
    %395 = vmatprep.mubr.f32.mxu0 0.0
    %396 = vmatmul.mubr.f32.gmra.mrb[0].mxu0 %v180
    %v397 = vpop.f32.mrb[0].mxu0
    %v398 = vadd.f32 %v93, %v397
    %v399 = vpop.f32.mrb[0].mxu0
    %400 = vmatprep.mubr.f32.mxu0 0.0
    %401 = vmatmul.mubr.f32.gmra.mrb[0].mxu0 %v183
    %v402 = vpop.f32.mrb[0].mxu0
    %v403 = vadd.f32 %v93, %v402
    %v404 = vpop.f32.mrb[0].mxu0
    %405 = vmatprep.mubr.f32.mxu0 0.0
    %406 = vmatmul.mubr.f32.gmra.mrb[0].mxu0 %v186
    %v407 = vpop.f32.mrb[0].mxu0
    %v408 = vadd.f32 %v93, %v407
    %v409 = vpop.f32.mrb[0].mxu0
    %410 = vmatprep.mubr.f32.mxu0 0.0
    %411 = vmatmul.mubr.f32.gmra.mrb[0].mxu0 %v189
    %v412 = vpop.f32.mrb[0].mxu0
    %v413 = vadd.f32 %v93, %v412
    %v414 = vpop.f32.mrb[0].mxu0
    %415 = vdwg.mxu0
    %v416 = vtanh.pop %v258
    %v417 = vtanh.pop %v263
    %v418 = vtanh.pop %v268
    %v419 = vtanh.pop %v273
    %v420 = vtanh.pop %v278
    %v421 = vtanh.pop %v283
    %v422 = vtanh.pop %v288
    %v423 = vtanh.pop %v293
    %v424 = vtanh.pop %v298
    %v425 = vtanh.pop %v303
    %v426 = vtanh.pop %v308
    %v427 = vtanh.pop %v313
    %v428 = vtanh.pop %v318
    %v429 = vtanh.pop %v323
    %v430 = vtanh.pop %v328
    %v431 = vtanh.pop %v333
    %v432 = vtanh.pop %v338
    %v433 = vtanh.pop %v343
    %v434 = vtanh.pop %v348
    %v435 = vtanh.pop %v353
    %v436 = vtanh.pop %v358
    %v437 = vtanh.pop %v363
    %v438 = vtanh.pop %v368
    %v439 = vtanh.pop %v373
    %v440 = vtanh.pop %v378
    %v441 = vtanh.pop %v383
    %v442 = vtanh.pop %v388
    %v443 = vtanh.pop %v393
    %v444 = vtanh.pop %v398
    %v445 = vtanh.pop %v403
    %v446 = vtanh.pop %v408
    %v447 = vtanh.pop %v413
    %v448 = vld [vmem:[%s2] sm:$0xff]
    %v449 = vld [vmem:[%s2 + $0x8] sm:$0xff]
    %v450 = vld [vmem:[%s2 + $0x10] sm:$0xff]
    %v451 = vld [vmem:[%s2 + $0x18] sm:$0xff]
    %v452 = vld [vmem:[%s2 + $0x20] sm:$0xff]
    %v453 = vld [vmem:[%s2 + $0x28] sm:$0xff]
    %vm454 = vcmask 64512
    %v456 = vsel %vm454, %v53, 0
    %v459 = vsel %vm454, %v54, 0
    %v462 = vsel %vm454, %v55, 0
    %v465 = vsel %vm454, %v56, 0
    %v468 = vsel %vm454, %v57, 0
    %v471 = vsel %vm454, %v58, 0
    %v474 = vsel %vm454, %v59, 0
    %v477 = vsel %vm454, %v60, 0
    %v480 = vsel %vm454, %v61, 0
    %v483 = vsel %vm454, %v62, 0
    %v486 = vsel %vm454, %v63, 0
    %v489 = vsel %vm454, %v64, 0
    %v492 = vsel %vm454, %v65, 0
    %v495 = vsel %vm454, %v66, 0
    %v498 = vsel %vm454, %v67, 0
    %v501 = vsel %vm454, %v68, 0
    %v504 = vsel %vm454, %v69, 0
    %v507 = vsel %vm454, %v70, 0
    %v510 = vsel %vm454, %v71, 0
    %v513 = vsel %vm454, %v72, 0
    %v516 = vsel %vm454, %v73, 0
    %v519 = vsel %vm454, %v74, 0
    %v522 = vsel %vm454, %v75, 0
    %v525 = vsel %vm454, %v76, 0
    %v528 = vsel %vm454, %v77, 0
    %v531 = vsel %vm454, %v78, 0
    %v534 = vsel %vm454, %v79, 0
    %v537 = vsel %vm454, %v80, 0
    %v540 = vsel %vm454, %v81, 0
    %v543 = vsel %vm454, %v82, 0
    %v546 = vsel %vm454, %v83, 0
    %v549 = vsel %vm454, %v84, 0
    %551 = vmatprep.subr.mxu0 0.0
    %552 = vmatpush1.msra.mxu0 %v452
    %553 = vmatprep.subr.mxu0 0.0
    %554 = vmatpush1.msra.mxu0 0.0
    %555 = vmatprep.subr.mxu0 0.0
    %556 = vmatpush1.msra.mxu0 0.0
    %557 = vmatprep.subr.mxu0 0.0
    %558 = vmatpush1.msra.mxu0 0.0
    %559 = vmatprep.subr.mxu0 0.0
    %560 = vmatpush1.msra.mxu0 0.0
    %561 = vmatprep.subr.mxu0 0.0
    %562 = vmatpush1.msra.mxu0 0.0
    %563 = vmatprep.subr.mxu0 0.0
    %564 = vmatpush1.msra.mxu0 0.0
    %565 = vmatprep.subr.mxu0 0.0
    %566 = vmatpush1.msra.mxu0 0.0
    %567 = vmatprep.subr.mxu0 0.0
    %568 = vmatpush1.msra.mxu0 0.0
    %569 = vmatprep.subr.mxu0 0.0
    %570 = vmatpush1.msra.mxu0 0.0
    %571 = vmatprep.subr.mxu0 0.0
    %572 = vmatpush1.msra.mxu0 0.0
    %573 = vmatprep.subr.mxu0 0.0
    %574 = vmatpush1.msra.mxu0 0.0
    %575 = vmatprep.subr.mxu0 0.0
    %576 = vmatpush1.msra.mxu0 0.0
    %577 = vmatprep.subr.mxu0 0.0
    %578 = vmatpush1.msra.mxu0 0.0
    %579 = vmatprep.subr.mxu0 0.0
    %580 = vmatpush1.msra.mxu0 0.0
    %581 = vmatprep.subr.mxu0 0.0
    %582 = vmatpush1.msra.mxu0 0.0
    %583 = vmatprep.subr.mxu0 0.0
    %584 = vmatpush1.msra.mxu0 0.0
    %585 = vmatprep.subr.mxu0 0.0
    %586 = vmatpush1.msra.mxu0 0.0
    %587 = vmatprep.subr.mxu0 0.0
    %588 = vmatpush1.msra.mxu0 0.0
    %589 = vmatprep.subr.mxu0 0.0
    %590 = vmatpush1.msra.mxu0 0.0
    %591 = vmatprep.subr.mxu0 0.0
    %592 = vmatpush1.msra.mxu0 0.0
    %593 = vmatprep.subr.mxu0 0.0
    %594 = vmatpush1.msra.mxu0 0.0
    %595 = vmatprep.subr.mxu0 0.0
    %596 = vmatpush1.msra.mxu0 0.0
    %597 = vmatprep.subr.mxu0 0.0
    %598 = vmatpush1.msra.mxu0 0.0
    %599 = vmatprep.subr.mxu0 0.0
    %600 = vmatpush1.msra.mxu0 0.0
    %601 = vmatprep.subr.mxu0 0.0
    %602 = vmatpush1.msra.mxu0 0.0
    %603 = vmatprep.subr.mxu0 0.0
    %604 = vmatpush1.msra.mxu0 0.0
    %605 = vmatprep.subr.mxu0 0.0
    %606 = vmatpush1.msra.mxu0 0.0
    %607 = vmatprep.subr.mxu0 0.0
    %608 = vmatpush1.msra.mxu0 0.0
    %609 = vmatprep.subr.mxu0 0.0
    %610 = vmatpush1.msra.mxu0 0.0
    %611 = vmatprep.subr.mxu0 0.0
    %612 = vmatpush1.msra.mxu0 0.0
    %613 = vmatprep.subr.mxu0 0.0
    %614 = vmatpush1.msra.mxu0 0.0
    %615 = vmatprep.mubr.f32.mxu0 0.0
    %616 = vmatmul.mubr.f32.gmra.mrb[0].mxu0 %v456
    %v617 = vpop.f32.mrb[0].mxu0
    %v618 = vadd.f32 0.0, %v617
    %v619 = vpop.f32.mrb[0].mxu0
    %620 = vmatprep.mubr.f32.mxu0 0.0
    %621 = vmatmul.mubr.f32.gmra.mrb[0].mxu0 %v459
    %v622 = vpop.f32.mrb[0].mxu0
    %v623 = vadd.f32 0.0, %v622
    %v624 = vpop.f32.mrb[0].mxu0
    %625 = vmatprep.mubr.f32.mxu0 0.0
    %626 = vmatmul.mubr.f32.gmra.mrb[0].mxu0 %v462
    %v627 = vpop.f32.mrb[0].mxu0
    %v628 = vadd.f32 0.0, %v627
    %v629 = vpop.f32.mrb[0].mxu0
    %630 = vmatprep.mubr.f32.mxu0 0.0
    %631 = vmatmul.mubr.f32.gmra.mrb[0].mxu0 %v465
    %v632 = vpop.f32.mrb[0].mxu0
    %v633 = vadd.f32 0.0, %v632
    %v634 = vpop.f32.mrb[0].mxu0
    %635 = vmatprep.mubr.f32.mxu0 0.0
    %636 = vmatmul.mubr.f32.gmra.mrb[0].mxu0 %v468
    %v637 = vpop.f32.mrb[0].mxu0
    %v638 = vadd.f32 0.0, %v637
    %v639 = vpop.f32.mrb[0].mxu0
    %640 = vmatprep.mubr.f32.mxu0 0.0
    %641 = vmatmul.mubr.f32.gmra.mrb[0].mxu0 %v471
    %v642 = vpop.f32.mrb[0].mxu0
    %v643 = vadd.f32 0.0, %v642
    %v644 = vpop.f32.mrb[0].mxu0
    %645 = vmatprep.mubr.f32.mxu0 0.0
    %646 = vmatmul.mubr.f32.gmra.mrb[0].mxu0 %v474
    %v647 = vpop.f32.mrb[0].mxu0
    %v648 = vadd.f32 0.0, %v647
    %v649 = vpop.f32.mrb[0].mxu0
    %650 = vmatprep.mubr.f32.mxu0 0.0
    %651 = vmatmul.mubr.f32.gmra.mrb[0].mxu0 %v477
    %v652 = vpop.f32.mrb[0].mxu0
    %v653 = vadd.f32 0.0, %v652
    %v654 = vpop.f32.mrb[0].mxu0
    %655 = vmatprep.mubr.f32.mxu0 0.0
    %656 = vmatmul.mubr.f32.gmra.mrb[0].mxu0 %v480
    %v657 = vpop.f32.mrb[0].mxu0
    %v658 = vadd.f32 0.0, %v657
    %v659 = vpop.f32.mrb[0].mxu0
    %660 = vmatprep.mubr.f32.mxu0 0.0
    %661 = vmatmul.mubr.f32.gmra.mrb[0].mxu0 %v483
    %v662 = vpop.f32.mrb[0].mxu0
    %v663 = vadd.f32 0.0, %v662
    %v664 = vpop.f32.mrb[0].mxu0
    %665 = vmatprep.mubr.f32.mxu0 0.0
    %666 = vmatmul.mubr.f32.gmra.mrb[0].mxu0 %v486
    %v667 = vpop.f32.mrb[0].mxu0
    %v668 = vadd.f32 0.0, %v667
    %v669 = vpop.f32.mrb[0].mxu0
    %670 = vmatprep.mubr.f32.mxu0 0.0
    %671 = vmatmul.mubr.f32.gmra.mrb[0].mxu0 %v489
    %v672 = vpop.f32.mrb[0].mxu0
    %v673 = vadd.f32 0.0, %v672
    %v674 = vpop.f32.mrb[0].mxu0
    %675 = vmatprep.mubr.f32.mxu0 0.0
    %676 = vmatmul.mubr.f32.gmra.mrb[0].mxu0 %v492
    %v677 = vpop.f32.mrb[0].mxu0
    %v678 = vadd.f32 0.0, %v677
    %v679 = vpop.f32.mrb[0].mxu0
    %680 = vmatprep.mubr.f32.mxu0 0.0
    %681 = vmatmul.mubr.f32.gmra.mrb[0].mxu0 %v495
    %v682 = vpop.f32.mrb[0].mxu0
    %v683 = vadd.f32 0.0, %v682
    %v684 = vpop.f32.mrb[0].mxu0
    %685 = vmatprep.mubr.f32.mxu0 0.0
    %686 = vmatmul.mubr.f32.gmra.mrb[0].mxu0 %v498
    %v687 = vpop.f32.mrb[0].mxu0
    %v688 = vadd.f32 0.0, %v687
    %v689 = vpop.f32.mrb[0].mxu0
    %690 = vmatprep.mubr.f32.mxu0 0.0
    %691 = vmatmul.mubr.f32.gmra.mrb[0].mxu0 %v501
    %v692 = vpop.f32.mrb[0].mxu0
    %v693 = vadd.f32 0.0, %v692
    %v694 = vpop.f32.mrb[0].mxu0
    %695 = vmatprep.mubr.f32.mxu0 0.0
    %696 = vmatmul.mubr.f32.gmra.mrb[0].mxu0 %v504
    %v697 = vpop.f32.mrb[0].mxu0
    %v698 = vadd.f32 0.0, %v697
    %v699 = vpop.f32.mrb[0].mxu0
    %700 = vmatprep.mubr.f32.mxu0 0.0
    %701 = vmatmul.mubr.f32.gmra.mrb[0].mxu0 %v507
    %v702 = vpop.f32.mrb[0].mxu0
    %v703 = vadd.f32 0.0, %v702
    %v704 = vpop.f32.mrb[0].mxu0
    %705 = vmatprep.mubr.f32.mxu0 0.0
    %706 = vmatmul.mubr.f32.gmra.mrb[0].mxu0 %v510
    %v707 = vpop.f32.mrb[0].mxu0
    %v708 = vadd.f32 0.0, %v707
    %v709 = vpop.f32.mrb[0].mxu0
    %710 = vmatprep.mubr.f32.mxu0 0.0
    %711 = vmatmul.mubr.f32.gmra.mrb[0].mxu0 %v513
    %v712 = vpop.f32.mrb[0].mxu0
    %v713 = vadd.f32 0.0, %v712
    %v714 = vpop.f32.mrb[0].mxu0
    %715 = vmatprep.mubr.f32.mxu0 0.0
    %716 = vmatmul.mubr.f32.gmra.mrb[0].mxu0 %v516
    %v717 = vpop.f32.mrb[0].mxu0
    %v718 = vadd.f32 0.0, %v717
    %v719 = vpop.f32.mrb[0].mxu0
    %720 = vmatprep.mubr.f32.mxu0 0.0
    %721 = vmatmul.mubr.f32.gmra.mrb[0].mxu0 %v519
    %v722 = vpop.f32.mrb[0].mxu0
    %v723 = vadd.f32 0.0, %v722
    %v724 = vpop.f32.mrb[0].mxu0
    %725 = vmatprep.mubr.f32.mxu0 0.0
    %726 = vmatmul.mubr.f32.gmra.mrb[0].mxu0 %v522
    %v727 = vpop.f32.mrb[0].mxu0
    %v728 = vadd.f32 0.0, %v727
    %v729 = vpop.f32.mrb[0].mxu0
    %730 = vmatprep.mubr.f32.mxu0 0.0
    %731 = vmatmul.mubr.f32.gmra.mrb[0].mxu0 %v525
    %v732 = vpop.f32.mrb[0].mxu0
    %v733 = vadd.f32 0.0, %v732
    %v734 = vpop.f32.mrb[0].mxu0
    %735 = vmatprep.mubr.f32.mxu0 0.0
    %736 = vmatmul.mubr.f32.gmra.mrb[0].mxu0 %v528
    %v737 = vpop.f32.mrb[0].mxu0
    %v738 = vadd.f32 0.0, %v737
    %v739 = vpop.f32.mrb[0].mxu0
    %740 = vmatprep.mubr.f32.mxu0 0.0
    %741 = vmatmul.mubr.f32.gmra.mrb[0].mxu0 %v531
    %v742 = vpop.f32.mrb[0].mxu0
    %v743 = vadd.f32 0.0, %v742
    %v744 = vpop.f32.mrb[0].mxu0
    %745 = vmatprep.mubr.f32.mxu0 0.0
    %746 = vmatmul.mubr.f32.gmra.mrb[0].mxu0 %v534
    %v747 = vpop.f32.mrb[0].mxu0
    %v748 = vadd.f32 0.0, %v747
    %v749 = vpop.f32.mrb[0].mxu0
    %750 = vmatprep.mubr.f32.mxu0 0.0
    %751 = vmatmul.mubr.f32.gmra.mrb[0].mxu0 %v537
    %v752 = vpop.f32.mrb[0].mxu0
    %v753 = vadd.f32 0.0, %v752
    %v754 = vpop.f32.mrb[0].mxu0
    %755 = vmatprep.mubr.f32.mxu0 0.0
    %756 = vmatmul.mubr.f32.gmra.mrb[0].mxu0 %v540
    %v757 = vpop.f32.mrb[0].mxu0
    %v758 = vadd.f32 0.0, %v757
    %v759 = vpop.f32.mrb[0].mxu0
    %760 = vmatprep.mubr.f32.mxu0 0.0
    %761 = vmatmul.mubr.f32.gmra.mrb[0].mxu0 %v543
    %v762 = vpop.f32.mrb[0].mxu0
    %v763 = vadd.f32 0.0, %v762
    %v764 = vpop.f32.mrb[0].mxu0
    %765 = vmatprep.mubr.f32.mxu0 0.0
    %766 = vmatmul.mubr.f32.gmra.mrb[0].mxu0 %v546
    %v767 = vpop.f32.mrb[0].mxu0
    %v768 = vadd.f32 0.0, %v767
    %v769 = vpop.f32.mrb[0].mxu0
    %770 = vmatprep.mubr.f32.mxu0 0.0
    %771 = vmatmul.mubr.f32.gmra.mrb[0].mxu0 %v549
    %v772 = vpop.f32.mrb[0].mxu0
    %v773 = vadd.f32 0.0, %v772
    %v774 = vpop.f32.mrb[0].mxu0
    %775 = vdwg.mxu0
    %v777 = vsel %vm94, %v416, 0
    %v780 = vsel %vm94, %v417, 0
    %v783 = vsel %vm94, %v418, 0
    %v786 = vsel %vm94, %v419, 0
    %v789 = vsel %vm94, %v420, 0
    %v792 = vsel %vm94, %v421, 0
    %v795 = vsel %vm94, %v422, 0
    %v798 = vsel %vm94, %v423, 0
    %v801 = vsel %vm94, %v424, 0
    %v804 = vsel %vm94, %v425, 0
    %v807 = vsel %vm94, %v426, 0
    %v810 = vsel %vm94, %v427, 0
    %v813 = vsel %vm94, %v428, 0
    %v816 = vsel %vm94, %v429, 0
    %v819 = vsel %vm94, %v430, 0
    %v822 = vsel %vm94, %v431, 0
    %v825 = vsel %vm94, %v432, 0
    %v828 = vsel %vm94, %v433, 0
    %v831 = vsel %vm94, %v434, 0
    %v834 = vsel %vm94, %v435, 0
    %v837 = vsel %vm94, %v436, 0
    %v840 = vsel %vm94, %v437, 0
    %v843 = vsel %vm94, %v438, 0
    %v846 = vsel %vm94, %v439, 0
    %v849 = vsel %vm94, %v440, 0
    %v852 = vsel %vm94, %v441, 0
    %v855 = vsel %vm94, %v442, 0
    %v858 = vsel %vm94, %v443, 0
    %v861 = vsel %vm94, %v444, 0
    %v864 = vsel %vm94, %v445, 0
    %v867 = vsel %vm94, %v446, 0
    %v870 = vsel %vm94, %v447, 0
    %872 = vmatprep.subr.mxu0 0.0
    %873 = vmatpush1.msra.mxu0 %v448
    %874 = vmatprep.subr.mxu0 0.0
    %875 = vmatpush1.msra.mxu0 %v449
    %876 = vmatprep.subr.mxu0 0.0
    %877 = vmatpush1.msra.mxu0 %v450
    %878 = vmatprep.subr.mxu0 0.0
    %879 = vmatpush1.msra.mxu0 %v451
    %880 = vmatprep.subr.mxu0 0.0
    %881 = vmatpush1.msra.mxu0 0.0
    %882 = vmatprep.subr.mxu0 0.0
    %883 = vmatpush1.msra.mxu0 0.0
    %884 = vmatprep.subr.mxu0 0.0
    %885 = vmatpush1.msra.mxu0 0.0
    %886 = vmatprep.subr.mxu0 0.0
    %887 = vmatpush1.msra.mxu0 0.0
    %888 = vmatprep.subr.mxu0 0.0
    %889 = vmatpush1.msra.mxu0 0.0
    %890 = vmatprep.subr.mxu0 0.0
    %891 = vmatpush1.msra.mxu0 0.0
    %892 = vmatprep.subr.mxu0 0.0
    %893 = vmatpush1.msra.mxu0 0.0
    %894 = vmatprep.subr.mxu0 0.0
    %895 = vmatpush1.msra.mxu0 0.0
    %896 = vmatprep.subr.mxu0 0.0
    %897 = vmatpush1.msra.mxu0 0.0
    %898 = vmatprep.subr.mxu0 0.0
    %899 = vmatpush1.msra.mxu0 0.0
    %900 = vmatprep.subr.mxu0 0.0
    %901 = vmatpush1.msra.mxu0 0.0
    %902 = vmatprep.subr.mxu0 0.0
    %903 = vmatpush1.msra.mxu0 0.0
    %904 = vmatprep.subr.mxu0 0.0
    %905 = vmatpush1.msra.mxu0 0.0
    %906 = vmatprep.subr.mxu0 0.0
    %907 = vmatpush1.msra.mxu0 0.0
    %908 = vmatprep.subr.mxu0 0.0
    %909 = vmatpush1.msra.mxu0 0.0
    %910 = vmatprep.subr.mxu0 0.0
    %911 = vmatpush1.msra.mxu0 0.0
    %912 = vmatprep.subr.mxu0 0.0
    %913 = vmatpush1.msra.mxu0 0.0
    %914 = vmatprep.subr.mxu0 0.0
    %915 = vmatpush1.msra.mxu0 0.0
    %916 = vmatprep.subr.mxu0 0.0
    %917 = vmatpush1.msra.mxu0 0.0
    %918 = vmatprep.subr.mxu0 0.0
    %919 = vmatpush1.msra.mxu0 0.0
    %920 = vmatprep.subr.mxu0 0.0
    %921 = vmatpush1.msra.mxu0 0.0
    %922 = vmatprep.subr.mxu0 0.0
    %923 = vmatpush1.msra.mxu0 0.0
    %924 = vmatprep.subr.mxu0 0.0
    %925 = vmatpush1.msra.mxu0 0.0
    %926 = vmatprep.subr.mxu0 0.0
    %927 = vmatpush1.msra.mxu0 0.0
    %928 = vmatprep.subr.mxu0 0.0
    %929 = vmatpush1.msra.mxu0 0.0
    %930 = vmatprep.subr.mxu0 0.0
    %931 = vmatpush1.msra.mxu0 0.0
    %932 = vmatprep.subr.mxu0 0.0
    %933 = vmatpush1.msra.mxu0 0.0
    %934 = vmatprep.subr.mxu0 0.0
    %935 = vmatpush1.msra.mxu0 0.0
    %936 = vmatprep.mubr.f32.mxu0 0.0
    %937 = vmatmul.mubr.f32.gmra.mrb[0].mxu0 %v777
    %v938 = vpop.f32.mrb[0].mxu0
    %v939 = vadd.f32 %v618, %v938
    %v940 = vpop.f32.mrb[0].mxu0
    %941 = vmatprep.mubr.f32.mxu0 0.0
    %942 = vmatmul.mubr.f32.gmra.mrb[0].mxu0 %v780
    %v943 = vpop.f32.mrb[0].mxu0
    %v944 = vadd.f32 %v623, %v943
    %v945 = vpop.f32.mrb[0].mxu0
    %946 = vmatprep.mubr.f32.mxu0 0.0
    %947 = vmatmul.mubr.f32.gmra.mrb[0].mxu0 %v783
    %v948 = vpop.f32.mrb[0].mxu0
    %v949 = vadd.f32 %v628, %v948
    %v950 = vpop.f32.mrb[0].mxu0
    %951 = vmatprep.mubr.f32.mxu0 0.0
    %952 = vmatmul.mubr.f32.gmra.mrb[0].mxu0 %v786
    %v953 = vpop.f32.mrb[0].mxu0
    %v954 = vadd.f32 %v633, %v953
    %v955 = vpop.f32.mrb[0].mxu0
    %956 = vmatprep.mubr.f32.mxu0 0.0
    %957 = vmatmul.mubr.f32.gmra.mrb[0].mxu0 %v789
    %v958 = vpop.f32.mrb[0].mxu0
    %v959 = vadd.f32 %v638, %v958
    %v960 = vpop.f32.mrb[0].mxu0
    %961 = vmatprep.mubr.f32.mxu0 0.0
    %962 = vmatmul.mubr.f32.gmra.mrb[0].mxu0 %v792
    %v963 = vpop.f32.mrb[0].mxu0
    %v964 = vadd.f32 %v643, %v963
    %v965 = vpop.f32.mrb[0].mxu0
    %966 = vmatprep.mubr.f32.mxu0 0.0
    %967 = vmatmul.mubr.f32.gmra.mrb[0].mxu0 %v795
    %v968 = vpop.f32.mrb[0].mxu0
    %v969 = vadd.f32 %v648, %v968
    %v970 = vpop.f32.mrb[0].mxu0
    %971 = vmatprep.mubr.f32.mxu0 0.0
    %972 = vmatmul.mubr.f32.gmra.mrb[0].mxu0 %v798
    %v973 = vpop.f32.mrb[0].mxu0
    %v974 = vadd.f32 %v653, %v973
    %v975 = vpop.f32.mrb[0].mxu0
    %976 = vmatprep.mubr.f32.mxu0 0.0
    %977 = vmatmul.mubr.f32.gmra.mrb[0].mxu0 %v801
    %v978 = vpop.f32.mrb[0].mxu0
    %v979 = vadd.f32 %v658, %v978
    %v980 = vpop.f32.mrb[0].mxu0
    %981 = vmatprep.mubr.f32.mxu0 0.0
    %982 = vmatmul.mubr.f32.gmra.mrb[0].mxu0 %v804
    %v983 = vpop.f32.mrb[0].mxu0
    %v984 = vadd.f32 %v663, %v983
    %v985 = vpop.f32.mrb[0].mxu0
    %986 = vmatprep.mubr.f32.mxu0 0.0
    %987 = vmatmul.mubr.f32.gmra.mrb[0].mxu0 %v807
    %v988 = vpop.f32.mrb[0].mxu0
    %v989 = vadd.f32 %v668, %v988
    %v990 = vpop.f32.mrb[0].mxu0
    %991 = vmatprep.mubr.f32.mxu0 0.0
    %992 = vmatmul.mubr.f32.gmra.mrb[0].mxu0 %v810
    %v993 = vpop.f32.mrb[0].mxu0
    %v994 = vadd.f32 %v673, %v993
    %v995 = vpop.f32.mrb[0].mxu0
    %996 = vmatprep.mubr.f32.mxu0 0.0
    %997 = vmatmul.mubr.f32.gmra.mrb[0].mxu0 %v813
    %v998 = vpop.f32.mrb[0].mxu0
    %v999 = vadd.f32 %v678, %v998
    %v1000 = vpop.f32.mrb[0].mxu0
    %1001 = vmatprep.mubr.f32.mxu0 0.0
    %1002 = vmatmul.mubr.f32.gmra.mrb[0].mxu0 %v816
    %v1003 = vpop.f32.mrb[0].mxu0
    %v1004 = vadd.f32 %v683, %v1003
    %v1005 = vpop.f32.mrb[0].mxu0
    %1006 = vmatprep.mubr.f32.mxu0 0.0
    %1007 = vmatmul.mubr.f32.gmra.mrb[0].mxu0 %v819
    %v1008 = vpop.f32.mrb[0].mxu0
    %v1009 = vadd.f32 %v688, %v1008
    %v1010 = vpop.f32.mrb[0].mxu0
    %1011 = vmatprep.mubr.f32.mxu0 0.0
    %1012 = vmatmul.mubr.f32.gmra.mrb[0].mxu0 %v822
    %v1013 = vpop.f32.mrb[0].mxu0
    %v1014 = vadd.f32 %v693, %v1013
    %v1015 = vpop.f32.mrb[0].mxu0
    %1016 = vmatprep.mubr.f32.mxu0 0.0
    %1017 = vmatmul.mubr.f32.gmra.mrb[0].mxu0 %v825
    %v1018 = vpop.f32.mrb[0].mxu0
    %v1019 = vadd.f32 %v698, %v1018
    %v1020 = vpop.f32.mrb[0].mxu0
    %1021 = vmatprep.mubr.f32.mxu0 0.0
    %1022 = vmatmul.mubr.f32.gmra.mrb[0].mxu0 %v828
    %v1023 = vpop.f32.mrb[0].mxu0
    %v1024 = vadd.f32 %v703, %v1023
    %v1025 = vpop.f32.mrb[0].mxu0
    %1026 = vmatprep.mubr.f32.mxu0 0.0
    %1027 = vmatmul.mubr.f32.gmra.mrb[0].mxu0 %v831
    %v1028 = vpop.f32.mrb[0].mxu0
    %v1029 = vadd.f32 %v708, %v1028
    %v1030 = vpop.f32.mrb[0].mxu0
    %1031 = vmatprep.mubr.f32.mxu0 0.0
    %1032 = vmatmul.mubr.f32.gmra.mrb[0].mxu0 %v834
    %v1033 = vpop.f32.mrb[0].mxu0
    %v1034 = vadd.f32 %v713, %v1033
    %v1035 = vpop.f32.mrb[0].mxu0
    %1036 = vmatprep.mubr.f32.mxu0 0.0
    %1037 = vmatmul.mubr.f32.gmra.mrb[0].mxu0 %v837
    %v1038 = vpop.f32.mrb[0].mxu0
    %v1039 = vadd.f32 %v718, %v1038
    %v1040 = vpop.f32.mrb[0].mxu0
    %1041 = vmatprep.mubr.f32.mxu0 0.0
    %1042 = vmatmul.mubr.f32.gmra.mrb[0].mxu0 %v840
    %v1043 = vpop.f32.mrb[0].mxu0
    %v1044 = vadd.f32 %v723, %v1043
    %v1045 = vpop.f32.mrb[0].mxu0
    %1046 = vmatprep.mubr.f32.mxu0 0.0
    %1047 = vmatmul.mubr.f32.gmra.mrb[0].mxu0 %v843
    %v1048 = vpop.f32.mrb[0].mxu0
    %v1049 = vadd.f32 %v728, %v1048
    %v1050 = vpop.f32.mrb[0].mxu0
    %1051 = vmatprep.mubr.f32.mxu0 0.0
    %1052 = vmatmul.mubr.f32.gmra.mrb[0].mxu0 %v846
    %v1053 = vpop.f32.mrb[0].mxu0
    %v1054 = vadd.f32 %v733, %v1053
    %v1055 = vpop.f32.mrb[0].mxu0
    %1056 = vmatprep.mubr.f32.mxu0 0.0
    %1057 = vmatmul.mubr.f32.gmra.mrb[0].mxu0 %v849
    %v1058 = vpop.f32.mrb[0].mxu0
    %v1059 = vadd.f32 %v738, %v1058
    %v1060 = vpop.f32.mrb[0].mxu0
    %1061 = vmatprep.mubr.f32.mxu0 0.0
    %1062 = vmatmul.mubr.f32.gmra.mrb[0].mxu0 %v852
    %v1063 = vpop.f32.mrb[0].mxu0
    %v1064 = vadd.f32 %v743, %v1063
    %v1065 = vpop.f32.mrb[0].mxu0
    %1066 = vmatprep.mubr.f32.mxu0 0.0
    %1067 = vmatmul.mubr.f32.gmra.mrb[0].mxu0 %v855
    %v1068 = vpop.f32.mrb[0].mxu0
    %v1069 = vadd.f32 %v748, %v1068
    %v1070 = vpop.f32.mrb[0].mxu0
    %1071 = vmatprep.mubr.f32.mxu0 0.0
    %1072 = vmatmul.mubr.f32.gmra.mrb[0].mxu0 %v858
    %v1073 = vpop.f32.mrb[0].mxu0
    %v1074 = vadd.f32 %v753, %v1073
    %v1075 = vpop.f32.mrb[0].mxu0
    %1076 = vmatprep.mubr.f32.mxu0 0.0
    %1077 = vmatmul.mubr.f32.gmra.mrb[0].mxu0 %v861
    %v1078 = vpop.f32.mrb[0].mxu0
    %v1079 = vadd.f32 %v758, %v1078
    %v1080 = vpop.f32.mrb[0].mxu0
    %1081 = vmatprep.mubr.f32.mxu0 0.0
    %1082 = vmatmul.mubr.f32.gmra.mrb[0].mxu0 %v864
    %v1083 = vpop.f32.mrb[0].mxu0
    %v1084 = vadd.f32 %v763, %v1083
    %v1085 = vpop.f32.mrb[0].mxu0
    %1086 = vmatprep.mubr.f32.mxu0 0.0
    %1087 = vmatmul.mubr.f32.gmra.mrb[0].mxu0 %v867
    %v1088 = vpop.f32.mrb[0].mxu0
    %v1089 = vadd.f32 %v768, %v1088
    %v1090 = vpop.f32.mrb[0].mxu0
    %1091 = vmatprep.mubr.f32.mxu0 0.0
    %1092 = vmatmul.mubr.f32.gmra.mrb[0].mxu0 %v870
    %v1093 = vpop.f32.mrb[0].mxu0
    %v1094 = vadd.f32 %v773, %v1093
    %v1095 = vpop.f32.mrb[0].mxu0
    %1096 = vdwg.mxu0
    %v1097 = vmul.f32 %v53, %v53
    %v1098 = vmul.f32 %v54, %v54
    %v1099 = vmul.f32 %v55, %v55
    %v1100 = vmul.f32 %v56, %v56
    %v1101 = vmul.f32 %v57, %v57
    %v1102 = vmul.f32 %v58, %v58
    %v1103 = vmul.f32 %v59, %v59
    %v1104 = vmul.f32 %v60, %v60
    %v1105 = vmul.f32 %v61, %v61
    %v1106 = vmul.f32 %v62, %v62
    %v1107 = vmul.f32 %v63, %v63
    %v1108 = vmul.f32 %v64, %v64
    %v1109 = vmul.f32 %v65, %v65
    %v1110 = vmul.f32 %v66, %v66
    %v1111 = vmul.f32 %v67, %v67
    %v1112 = vmul.f32 %v68, %v68
    %v1113 = vmul.f32 %v69, %v69
    %v1114 = vmul.f32 %v70, %v70
    %v1115 = vmul.f32 %v71, %v71
    %v1116 = vmul.f32 %v72, %v72
    %v1117 = vmul.f32 %v73, %v73
    %v1118 = vmul.f32 %v74, %v74
    %v1119 = vmul.f32 %v75, %v75
    %v1120 = vmul.f32 %v76, %v76
    %v1121 = vmul.f32 %v77, %v77
    %v1122 = vmul.f32 %v78, %v78
    %v1123 = vmul.f32 %v79, %v79
    %v1124 = vmul.f32 %v80, %v80
    %v1125 = vmul.f32 %v81, %v81
    %v1126 = vmul.f32 %v82, %v82
    %v1127 = vmul.f32 %v83, %v83
    %v1128 = vmul.f32 %v84, %v84
    %v1130 = vsel %vm454, %v1097, 0
    %v1133 = vsel %vm454, %v1098, 0
    %v1136 = vsel %vm454, %v1099, 0
    %v1139 = vsel %vm454, %v1100, 0
    %v1142 = vsel %vm454, %v1101, 0
    %v1145 = vsel %vm454, %v1102, 0
    %v1148 = vsel %vm454, %v1103, 0
    %v1151 = vsel %vm454, %v1104, 0
    %v1154 = vsel %vm454, %v1105, 0
    %v1157 = vsel %vm454, %v1106, 0
    %v1160 = vsel %vm454, %v1107, 0
    %v1163 = vsel %vm454, %v1108, 0
    %v1166 = vsel %vm454, %v1109, 0
    %v1169 = vsel %vm454, %v1110, 0
    %v1172 = vsel %vm454, %v1111, 0
    %v1175 = vsel %vm454, %v1112, 0
    %v1178 = vsel %vm454, %v1113, 0
    %v1181 = vsel %vm454, %v1114, 0
    %v1184 = vsel %vm454, %v1115, 0
    %v1187 = vsel %vm454, %v1116, 0
    %v1190 = vsel %vm454, %v1117, 0
    %v1193 = vsel %vm454, %v1118, 0
    %v1196 = vsel %vm454, %v1119, 0
    %v1199 = vsel %vm454, %v1120, 0
    %v1202 = vsel %vm454, %v1121, 0
    %v1205 = vsel %vm454, %v1122, 0
    %v1208 = vsel %vm454, %v1123, 0
    %v1211 = vsel %vm454, %v1124, 0
    %v1214 = vsel %vm454, %v1125, 0
    %v1217 = vsel %vm454, %v1126, 0
    %v1220 = vsel %vm454, %v1127, 0
    %v1223 = vsel %vm454, %v1128, 0
    %1225 = vmatprep.subr.mxu0 0.0
    %1226 = vmatpush1.msra.mxu0 %v453
    %1227 = vmatprep.subr.mxu0 0.0
    %1228 = vmatpush1.msra.mxu0 0.0
    %1229 = vmatprep.subr.mxu0 0.0
    %1230 = vmatpush1.msra.mxu0 0.0
    %1231 = vmatprep.subr.mxu0 0.0
    %1232 = vmatpush1.msra.mxu0 0.0
    %1233 = vmatprep.subr.mxu0 0.0
    %1234 = vmatpush1.msra.mxu0 0.0
    %1235 = vmatprep.subr.mxu0 0.0
    %1236 = vmatpush1.msra.mxu0 0.0
    %1237 = vmatprep.subr.mxu0 0.0
    %1238 = vmatpush1.msra.mxu0 0.0
    %1239 = vmatprep.subr.mxu0 0.0
    %1240 = vmatpush1.msra.mxu0 0.0
    %1241 = vmatprep.subr.mxu0 0.0
    %1242 = vmatpush1.msra.mxu0 0.0
    %1243 = vmatprep.subr.mxu0 0.0
    %1244 = vmatpush1.msra.mxu0 0.0
    %1245 = vmatprep.subr.mxu0 0.0
    %1246 = vmatpush1.msra.mxu0 0.0
    %1247 = vmatprep.subr.mxu0 0.0
    %1248 = vmatpush1.msra.mxu0 0.0
    %1249 = vmatprep.subr.mxu0 0.0
    %1250 = vmatpush1.msra.mxu0 0.0
    %1251 = vmatprep.subr.mxu0 0.0
    %1252 = vmatpush1.msra.mxu0 0.0
    %1253 = vmatprep.subr.mxu0 0.0
    %1254 = vmatpush1.msra.mxu0 0.0
    %1255 = vmatprep.subr.mxu0 0.0
    %1256 = vmatpush1.msra.mxu0 0.0
    %1257 = vmatprep.subr.mxu0 0.0
    %1258 = vmatpush1.msra.mxu0 0.0
    %1259 = vmatprep.subr.mxu0 0.0
    %1260 = vmatpush1.msra.mxu0 0.0
    %1261 = vmatprep.subr.mxu0 0.0
    %1262 = vmatpush1.msra.mxu0 0.0
    %1263 = vmatprep.subr.mxu0 0.0
    %1264 = vmatpush1.msra.mxu0 0.0
    %1265 = vmatprep.subr.mxu0 0.0
    %1266 = vmatpush1.msra.mxu0 0.0
    %1267 = vmatprep.subr.mxu0 0.0
    %1268 = vmatpush1.msra.mxu0 0.0
    %1269 = vmatprep.subr.mxu0 0.0
    %1270 = vmatpush1.msra.mxu0 0.0
    %1271 = vmatprep.subr.mxu0 0.0
    %1272 = vmatpush1.msra.mxu0 0.0
    %1273 = vmatprep.subr.mxu0 0.0
    %1274 = vmatpush1.msra.mxu0 0.0
    %1275 = vmatprep.subr.mxu0 0.0
    %1276 = vmatpush1.msra.mxu0 0.0
    %1277 = vmatprep.subr.mxu0 0.0
    %1278 = vmatpush1.msra.mxu0 0.0
    %1279 = vmatprep.subr.mxu0 0.0
    %1280 = vmatpush1.msra.mxu0 0.0
    %1281 = vmatprep.subr.mxu0 0.0
    %1282 = vmatpush1.msra.mxu0 0.0
    %1283 = vmatprep.subr.mxu0 0.0
    %1284 = vmatpush1.msra.mxu0 0.0
    %1285 = vmatprep.subr.mxu0 0.0
    %1286 = vmatpush1.msra.mxu0 0.0
    %1287 = vmatprep.subr.mxu0 0.0
    %1288 = vmatpush1.msra.mxu0 0.0
    %1289 = vmatprep.mubr.f32.mxu0 0.0
    %1290 = vmatmul.mubr.f32.gmra.mrb[0].mxu0 %v1130
    %v1291 = vpop.f32.mrb[0].mxu0
    %v1292 = vadd.f32 0.0, %v1291
    %v1293 = vpop.f32.mrb[0].mxu0
    %1294 = vmatprep.mubr.f32.mxu0 0.0
    %1295 = vmatmul.mubr.f32.gmra.mrb[0].mxu0 %v1133
    %v1296 = vpop.f32.mrb[0].mxu0
    %v1297 = vadd.f32 0.0, %v1296
    %v1298 = vpop.f32.mrb[0].mxu0
    %1299 = vmatprep.mubr.f32.mxu0 0.0
    %1300 = vmatmul.mubr.f32.gmra.mrb[0].mxu0 %v1136
    %v1301 = vpop.f32.mrb[0].mxu0
    %v1302 = vadd.f32 0.0, %v1301
    %v1303 = vpop.f32.mrb[0].mxu0
    %1304 = vmatprep.mubr.f32.mxu0 0.0
    %1305 = vmatmul.mubr.f32.gmra.mrb[0].mxu0 %v1139
    %v1306 = vpop.f32.mrb[0].mxu0
    %v1307 = vadd.f32 0.0, %v1306
    %v1308 = vpop.f32.mrb[0].mxu0
    %1309 = vmatprep.mubr.f32.mxu0 0.0
    %1310 = vmatmul.mubr.f32.gmra.mrb[0].mxu0 %v1142
    %v1311 = vpop.f32.mrb[0].mxu0
    %v1312 = vadd.f32 0.0, %v1311
    %v1313 = vpop.f32.mrb[0].mxu0
    %1314 = vmatprep.mubr.f32.mxu0 0.0
    %1315 = vmatmul.mubr.f32.gmra.mrb[0].mxu0 %v1145
    %v1316 = vpop.f32.mrb[0].mxu0
    %v1317 = vadd.f32 0.0, %v1316
    %v1318 = vpop.f32.mrb[0].mxu0
    %1319 = vmatprep.mubr.f32.mxu0 0.0
    %1320 = vmatmul.mubr.f32.gmra.mrb[0].mxu0 %v1148
    %v1321 = vpop.f32.mrb[0].mxu0
    %v1322 = vadd.f32 0.0, %v1321
    %v1323 = vpop.f32.mrb[0].mxu0
    %1324 = vmatprep.mubr.f32.mxu0 0.0
    %1325 = vmatmul.mubr.f32.gmra.mrb[0].mxu0 %v1151
    %v1326 = vpop.f32.mrb[0].mxu0
    %v1327 = vadd.f32 0.0, %v1326
    %v1328 = vpop.f32.mrb[0].mxu0
    %1329 = vmatprep.mubr.f32.mxu0 0.0
    %1330 = vmatmul.mubr.f32.gmra.mrb[0].mxu0 %v1154
    %v1331 = vpop.f32.mrb[0].mxu0
    %v1332 = vadd.f32 0.0, %v1331
    %v1333 = vpop.f32.mrb[0].mxu0
    %1334 = vmatprep.mubr.f32.mxu0 0.0
    %1335 = vmatmul.mubr.f32.gmra.mrb[0].mxu0 %v1157
    %v1336 = vpop.f32.mrb[0].mxu0
    %v1337 = vadd.f32 0.0, %v1336
    %v1338 = vpop.f32.mrb[0].mxu0
    %1339 = vmatprep.mubr.f32.mxu0 0.0
    %1340 = vmatmul.mubr.f32.gmra.mrb[0].mxu0 %v1160
    %v1341 = vpop.f32.mrb[0].mxu0
    %v1342 = vadd.f32 0.0, %v1341
    %v1343 = vpop.f32.mrb[0].mxu0
    %1344 = vmatprep.mubr.f32.mxu0 0.0
    %1345 = vmatmul.mubr.f32.gmra.mrb[0].mxu0 %v1163
    %v1346 = vpop.f32.mrb[0].mxu0
    %v1347 = vadd.f32 0.0, %v1346
    %v1348 = vpop.f32.mrb[0].mxu0
    %1349 = vmatprep.mubr.f32.mxu0 0.0
    %1350 = vmatmul.mubr.f32.gmra.mrb[0].mxu0 %v1166
    %v1351 = vpop.f32.mrb[0].mxu0
    %v1352 = vadd.f32 0.0, %v1351
    %v1353 = vpop.f32.mrb[0].mxu0
    %1354 = vmatprep.mubr.f32.mxu0 0.0
    %1355 = vmatmul.mubr.f32.gmra.mrb[0].mxu0 %v1169
    %v1356 = vpop.f32.mrb[0].mxu0
    %v1357 = vadd.f32 0.0, %v1356
    %v1358 = vpop.f32.mrb[0].mxu0
    %1359 = vmatprep.mubr.f32.mxu0 0.0
    %1360 = vmatmul.mubr.f32.gmra.mrb[0].mxu0 %v1172
    %v1361 = vpop.f32.mrb[0].mxu0
    %v1362 = vadd.f32 0.0, %v1361
    %v1363 = vpop.f32.mrb[0].mxu0
    %1364 = vmatprep.mubr.f32.mxu0 0.0
    %1365 = vmatmul.mubr.f32.gmra.mrb[0].mxu0 %v1175
    %v1366 = vpop.f32.mrb[0].mxu0
    %v1367 = vadd.f32 0.0, %v1366
    %v1368 = vpop.f32.mrb[0].mxu0
    %1369 = vmatprep.mubr.f32.mxu0 0.0
    %1370 = vmatmul.mubr.f32.gmra.mrb[0].mxu0 %v1178
    %v1371 = vpop.f32.mrb[0].mxu0
    %v1372 = vadd.f32 0.0, %v1371
    %v1373 = vpop.f32.mrb[0].mxu0
    %1374 = vmatprep.mubr.f32.mxu0 0.0
    %1375 = vmatmul.mubr.f32.gmra.mrb[0].mxu0 %v1181
    %v1376 = vpop.f32.mrb[0].mxu0
    %v1377 = vadd.f32 0.0, %v1376
    %v1378 = vpop.f32.mrb[0].mxu0
    %1379 = vmatprep.mubr.f32.mxu0 0.0
    %1380 = vmatmul.mubr.f32.gmra.mrb[0].mxu0 %v1184
    %v1381 = vpop.f32.mrb[0].mxu0
    %v1382 = vadd.f32 0.0, %v1381
    %v1383 = vpop.f32.mrb[0].mxu0
    %1384 = vmatprep.mubr.f32.mxu0 0.0
    %1385 = vmatmul.mubr.f32.gmra.mrb[0].mxu0 %v1187
    %v1386 = vpop.f32.mrb[0].mxu0
    %v1387 = vadd.f32 0.0, %v1386
    %v1388 = vpop.f32.mrb[0].mxu0
    %1389 = vmatprep.mubr.f32.mxu0 0.0
    %1390 = vmatmul.mubr.f32.gmra.mrb[0].mxu0 %v1190
    %v1391 = vpop.f32.mrb[0].mxu0
    %v1392 = vadd.f32 0.0, %v1391
    %v1393 = vpop.f32.mrb[0].mxu0
    %1394 = vmatprep.mubr.f32.mxu0 0.0
    %1395 = vmatmul.mubr.f32.gmra.mrb[0].mxu0 %v1193
    %v1396 = vpop.f32.mrb[0].mxu0
    %v1397 = vadd.f32 0.0, %v1396
    %v1398 = vpop.f32.mrb[0].mxu0
    %1399 = vmatprep.mubr.f32.mxu0 0.0
    %1400 = vmatmul.mubr.f32.gmra.mrb[0].mxu0 %v1196
    %v1401 = vpop.f32.mrb[0].mxu0
    %v1402 = vadd.f32 0.0, %v1401
    %v1403 = vpop.f32.mrb[0].mxu0
    %1404 = vmatprep.mubr.f32.mxu0 0.0
    %1405 = vmatmul.mubr.f32.gmra.mrb[0].mxu0 %v1199
    %v1406 = vpop.f32.mrb[0].mxu0
    %v1407 = vadd.f32 0.0, %v1406
    %v1408 = vpop.f32.mrb[0].mxu0
    %1409 = vmatprep.mubr.f32.mxu0 0.0
    %1410 = vmatmul.mubr.f32.gmra.mrb[0].mxu0 %v1202
    %v1411 = vpop.f32.mrb[0].mxu0
    %v1412 = vadd.f32 0.0, %v1411
    %v1413 = vpop.f32.mrb[0].mxu0
    %1414 = vmatprep.mubr.f32.mxu0 0.0
    %1415 = vmatmul.mubr.f32.gmra.mrb[0].mxu0 %v1205
    %v1416 = vpop.f32.mrb[0].mxu0
    %v1417 = vadd.f32 0.0, %v1416
    %v1418 = vpop.f32.mrb[0].mxu0
    %1419 = vmatprep.mubr.f32.mxu0 0.0
    %1420 = vmatmul.mubr.f32.gmra.mrb[0].mxu0 %v1208
    %v1421 = vpop.f32.mrb[0].mxu0
    %v1422 = vadd.f32 0.0, %v1421
    %v1423 = vpop.f32.mrb[0].mxu0
    %1424 = vmatprep.mubr.f32.mxu0 0.0
    %1425 = vmatmul.mubr.f32.gmra.mrb[0].mxu0 %v1211
    %v1426 = vpop.f32.mrb[0].mxu0
    %v1427 = vadd.f32 0.0, %v1426
    %v1428 = vpop.f32.mrb[0].mxu0
    %1429 = vmatprep.mubr.f32.mxu0 0.0
    %1430 = vmatmul.mubr.f32.gmra.mrb[0].mxu0 %v1214
    %v1431 = vpop.f32.mrb[0].mxu0
    %v1432 = vadd.f32 0.0, %v1431
    %v1433 = vpop.f32.mrb[0].mxu0
    %1434 = vmatprep.mubr.f32.mxu0 0.0
    %1435 = vmatmul.mubr.f32.gmra.mrb[0].mxu0 %v1217
    %v1436 = vpop.f32.mrb[0].mxu0
    %v1437 = vadd.f32 0.0, %v1436
    %v1438 = vpop.f32.mrb[0].mxu0
    %1439 = vmatprep.mubr.f32.mxu0 0.0
    %1440 = vmatmul.mubr.f32.gmra.mrb[0].mxu0 %v1220
    %v1441 = vpop.f32.mrb[0].mxu0
    %v1442 = vadd.f32 0.0, %v1441
    %v1443 = vpop.f32.mrb[0].mxu0
    %1444 = vmatprep.mubr.f32.mxu0 0.0
    %1445 = vmatmul.mubr.f32.gmra.mrb[0].mxu0 %v1223
    %v1446 = vpop.f32.mrb[0].mxu0
    %v1447 = vadd.f32 0.0, %v1446
    %v1448 = vpop.f32.mrb[0].mxu0
    %1449 = vdwg.mxu0
    %v1450 = vadd.f32 %v939, %v1292
    %v1451 = vadd.f32 %v944, %v1297
    %v1452 = vadd.f32 %v949, %v1302
    %v1453 = vadd.f32 %v954, %v1307
    %v1454 = vadd.f32 %v959, %v1312
    %v1455 = vadd.f32 %v964, %v1317
    %v1456 = vadd.f32 %v969, %v1322
    %v1457 = vadd.f32 %v974, %v1327
    %v1458 = vadd.f32 %v979, %v1332
    %v1459 = vadd.f32 %v984, %v1337
    %v1460 = vadd.f32 %v989, %v1342
    %v1461 = vadd.f32 %v994, %v1347
    %v1462 = vadd.f32 %v999, %v1352
    %v1463 = vadd.f32 %v1004, %v1357
    %v1464 = vadd.f32 %v1009, %v1362
    %v1465 = vadd.f32 %v1014, %v1367
    %v1466 = vadd.f32 %v1019, %v1372
    %v1467 = vadd.f32 %v1024, %v1377
    %v1468 = vadd.f32 %v1029, %v1382
    %v1469 = vadd.f32 %v1034, %v1387
    %v1470 = vadd.f32 %v1039, %v1392
    %v1471 = vadd.f32 %v1044, %v1397
    %v1472 = vadd.f32 %v1049, %v1402
    %v1473 = vadd.f32 %v1054, %v1407
    %v1474 = vadd.f32 %v1059, %v1412
    %v1475 = vadd.f32 %v1064, %v1417
    %v1476 = vadd.f32 %v1069, %v1422
    %v1477 = vadd.f32 %v1074, %v1427
    %v1478 = vadd.f32 %v1079, %v1432
    %v1479 = vadd.f32 %v1084, %v1437
    %v1480 = vadd.f32 %v1089, %v1442
    %v1481 = vadd.f32 %v1094, %v1447
    %v1482 = vlaneseq
    %v1483 = vshrl.u32 %v1482, 7
    %v1484 = vsub.s32 0, %v1483
    %v1485 = vrot.slane %v85, %v1484
    %v1486 = vadd.f32 %v1450, %v1485
    %v1487 = vadd.f32 %v1451, %v1485
    %v1488 = vadd.f32 %v1452, %v1485
    %v1489 = vadd.f32 %v1453, %v1485
    %v1490 = vadd.f32 %v1454, %v1485
    %v1491 = vadd.f32 %v1455, %v1485
    %v1492 = vadd.f32 %v1456, %v1485
    %v1493 = vadd.f32 %v1457, %v1485
    %v1494 = vadd.f32 %v1458, %v1485
    %v1495 = vadd.f32 %v1459, %v1485
    %v1496 = vadd.f32 %v1460, %v1485
    %v1497 = vadd.f32 %v1461, %v1485
    %v1498 = vadd.f32 %v1462, %v1485
    %v1499 = vadd.f32 %v1463, %v1485
    %v1500 = vadd.f32 %v1464, %v1485
    %v1501 = vadd.f32 %v1465, %v1485
    %v1502 = vadd.f32 %v1466, %v1485
    %v1503 = vadd.f32 %v1467, %v1485
    %v1504 = vadd.f32 %v1468, %v1485
    %v1505 = vadd.f32 %v1469, %v1485
    %v1506 = vadd.f32 %v1470, %v1485
    %v1507 = vadd.f32 %v1471, %v1485
    %v1508 = vadd.f32 %v1472, %v1485
    %v1509 = vadd.f32 %v1473, %v1485
    %v1510 = vadd.f32 %v1474, %v1485
    %v1511 = vadd.f32 %v1475, %v1485
    %v1512 = vadd.f32 %v1476, %v1485
    %v1513 = vadd.f32 %v1477, %v1485
    %v1514 = vadd.f32 %v1478, %v1485
    %v1515 = vadd.f32 %v1479, %v1485
    %v1516 = vadd.f32 %v1480, %v1485
    %v1517 = vadd.f32 %v1481, %v1485
    %1518 = vst [vmem:[#allocation2] sm:$0xff] %v1486
    %1519 = vst [vmem:[#allocation2 + $0x8] sm:$0xff] %v1487
    %1520 = vst [vmem:[#allocation2 + $0x10] sm:$0xff] %v1488
    %1521 = vst [vmem:[#allocation2 + $0x18] sm:$0xff] %v1489
    %1522 = vst [vmem:[#allocation2 + $0x20] sm:$0xff] %v1490
    %1523 = vst [vmem:[#allocation2 + $0x28] sm:$0xff] %v1491
    %1524 = vst [vmem:[#allocation2 + $0x30] sm:$0xff] %v1492
    %1525 = vst [vmem:[#allocation2 + $0x38] sm:$0xff] %v1493
    %1526 = vst [vmem:[#allocation2 + $0x40] sm:$0xff] %v1494
    %1527 = vst [vmem:[#allocation2 + $0x48] sm:$0xff] %v1495
    %1528 = vst [vmem:[#allocation2 + $0x50] sm:$0xff] %v1496
    %1529 = vst [vmem:[#allocation2 + $0x58] sm:$0xff] %v1497
    %1530 = vst [vmem:[#allocation2 + $0x60] sm:$0xff] %v1498
    %1531 = vst [vmem:[#allocation2 + $0x68] sm:$0xff] %v1499
    %1532 = vst [vmem:[#allocation2 + $0x70] sm:$0xff] %v1500
    %1533 = vst [vmem:[#allocation2 + $0x78] sm:$0xff] %v1501
    %1534 = vst [vmem:[#allocation2 + $0x80] sm:$0xff] %v1502
    %1535 = vst [vmem:[#allocation2 + $0x88] sm:$0xff] %v1503
    %1536 = vst [vmem:[#allocation2 + $0x90] sm:$0xff] %v1504
    %1537 = vst [vmem:[#allocation2 + $0x98] sm:$0xff] %v1505
    %1538 = vst [vmem:[#allocation2 + $0xa0] sm:$0xff] %v1506
    %1539 = vst [vmem:[#allocation2 + $0xa8] sm:$0xff] %v1507
    %1540 = vst [vmem:[#allocation2 + $0xb0] sm:$0xff] %v1508
    %1541 = vst [vmem:[#allocation2 + $0xb8] sm:$0xff] %v1509
    %1542 = vst [vmem:[#allocation2 + $0xc0] sm:$0xff] %v1510
    %1543 = vst [vmem:[#allocation2 + $0xc8] sm:$0xff] %v1511
    %1544 = vst [vmem:[#allocation2 + $0xd0] sm:$0xff] %v1512
    %1545 = vst [vmem:[#allocation2 + $0xd8] sm:$0xff] %v1513
    %1546 = vst [vmem:[#allocation2 + $0xe0] sm:$0xff] %v1514
    %1547 = vst [vmem:[#allocation2 + $0xe8] sm:$0xff] %v1515
    %1548 = vst [vmem:[#allocation2 + $0xf0] sm:$0xff] %v1516
    %1549 = vst [vmem:[#allocation2 + $0xf8] sm:$0xff] %v1517
    // Predicated region
    $region22: #{tpu_custom_call.1} parent=1 // pred_check
      _
    $region23: #{tpu_custom_call.1} parent=1 // pred_check_branch
      %1551 = sbr.rel (0) target = $region25
    $region24: #{tpu_custom_call.1} parent=1 // pred_region
      %s1553 = ssub.s32 4096, 4096
      %1554 = vsyncadd [#allocation3], %s1553
      %s1555 = sshll.u32 [#allocation2], 4
      %s1556 = int_to_ptr.vmem [resolvable:$true] %s1555
      %1561 = dma.vmem_to_hbm [thread:$0]  %s1556, 4096, %s5, [#allocation3], 128, 128, 8
    $region25: #{tpu_custom_call.1} parent=1 // pred_fallthru
      _
    // Predicated region
    $region26: #{tpu_custom_call.1} parent=1 // pred_check
      _
    $region27: #{tpu_custom_call.1} parent=1 // pred_check_branch
      %1563 = sbr.rel (0) target = $region29
    $region28: #{tpu_custom_call.1} parent=1 // pred_region
      %1564 = dma.done [#allocation3], 4096
    $region29: #{tpu_custom_call.1} parent=1 // pred_fallthru
      _
    %1565 = vsyncpa [#allocation3], 1

</llo_original>
